<compile_context>
chip_gen: v5e
topology: v5e:2x2
jax: 0.10.0
libtpu: 0.0.40
codegen_flags: <defaults>
</compile_context>

<pallas_src>
import jax
import jax.numpy as jnp
from jax.experimental import pallas as pl
from jax.experimental.pallas import tpu as pltpu


def _critic_head2_kernel(x_ref, w_ref, b_ref, o_ref):
    # x_ref: [TB, F] (streamed), w_ref: [2, F] (resident), b_ref: [1, 2],
    # o_ref: [TB, 2]
    acc = jax.lax.dot_general(
        x_ref[...], w_ref[...],
        dimension_numbers=(((1,), (1,)), ((), ())),   # contract F with F (trans_b)
        preferred_element_type=jnp.float32,
    )
    # Plain broadcast bias add: (TB, 2) + (1, 2).
    o_ref[...] = (acc + b_ref[...]).astype(o_ref.dtype)


def _round_up_8(n):
    return ((int(n) + 7) // 8) * 8


def _device_vmem_params():
    """Per-generation (tile budget bytes, vmem_limit_bytes or None)."""
    kind = ""
    try:
        kind = jax.devices()[0].device_kind.lower()
    except Exception:
        pass
    if "v7" in kind:
        # 64 MiB physical VMEM per TensorCore: keep all pipelined residents
        # well under it and raise the scoped limit accordingly.
        return 40 << 20, 56 << 20
    if "v6" in kind:
        # 128 MiB physical: go past the 32 MiB scoped default for fatter tiles.
        return 56 << 20, 80 << 20
    # v5e (16 MiB scoped default) and unknown chips: conservative, no override.
    return 12 << 20, None


def _pick_batch_tile(B, F, x_dtype_bytes, budget_bytes):
    """Largest batch tile whose double-buffered residents fit the budget.

    Accounts for: x slab (2 * TB * F * itemsize), lane-padded output buffers
    (2 * TB * 128 * 4), sublane-padded [2, F] weight (2 * 8 * F * 4) and the
    padded bias block.
    """
    per_row = 2 * F * x_dtype_bytes + 2 * 128 * 4           # x + padded output
    resident = 2 * 8 * F * 4 + 2 * 8 * 128 * 4              # weight + bias blocks
    avail = max(budget_bytes - resident, 8 * per_row)
    tb = max(8, (avail // per_row) // 8 * 8)
    if B > 16:
        # Guarantee >= 2 grid steps so the "parallel" batch axis can shard
        # across v7x's two TensorCores (harmless on v5e/v6e).
        tb = min(tb, _round_up_8(pl.cdiv(B, 2)))
    # Never make the block larger than the (row-padded) batch itself.
    tb = min(tb, B if B < 8 else _round_up_8(B))
    return int(tb)


@jax.jit
def critic_head2(x, weight, bias):
    """x: [B, F], weight: [2, F] (native PyTorch layout), bias: [2]."""
    B, F = x.shape
    budget, vmem_limit = _device_vmem_params()
    tb = _pick_batch_tile(B, F, x.dtype.itemsize, budget)
    grid = (pl.cdiv(B, tb),)                     # remainder block masked by Pallas
    bias2d = bias.reshape(1, 2).astype(jnp.float32)

    return pl.pallas_call(
        _critic_head2_kernel,
        out_shape=jax.ShapeDtypeStruct((B, 2), x.dtype),
        grid_spec=pltpu.PrefetchScalarGridSpec(
            num_scalar_prefetch=0,
            grid=grid,
            in_specs=[
                # streamed x tiles (default depth-2 double buffering)
                pl.BlockSpec((tb, F), lambda i: (i, 0)),
                # weight resident in VMEM, native [2, F] layout (no lane padding)
                pl.BlockSpec((2, F), lambda i: (0, 0)),
                # bias as a tiny resident (1, 2) VMEM block -> broadcast add
                pl.BlockSpec((1, 2), lambda i: (0, 0)),
            ],
            out_specs=pl.BlockSpec((tb, 2), lambda i: (i, 0)),
        ),
        compiler_params=pltpu.CompilerParams(
            # No reduction carried across batch tiles -> shardable across
            # TensorCores on v7x; harmless elsewhere.
            dimension_semantics=("parallel",),
            vmem_limit_bytes=vmem_limit,
        ),
    )(x, weight, bias2d)


def orthogonal_init(key, shape, dtype=jnp.float32):
    """Mimics nn.init.orthogonal_ for a 2D weight of shape (rows, cols)."""
    rows, cols = shape
    n, m = (cols, rows) if rows < cols else (rows, cols)
    a = jax.random.normal(key, (n, m), dtype=jnp.float32)
    q, r = jnp.linalg.qr(a)
    d = jnp.sign(jnp.diagonal(r))
    q = q * d[None, :]
    w = q.T if rows < cols else q
    return w.astype(dtype)


if __name__ == "__main__":
    key = jax.random.PRNGKey(0)
    k_x, k_w, k_x2 = jax.random.split(key, 3)

    batch, input_size = 8, 32
    x = jax.random.normal(k_x, (batch, input_size), dtype=jnp.float32)

    # Deterministic parameter init matching CriticHead2.__init__:
    #   weight: orthogonal, shape (2, input_size); bias: zeros, shape (2,)
    weight = orthogonal_init(k_w, (2, input_size))
    bias = jnp.zeros((2,), dtype=jnp.float32)

    out = critic_head2(x, weight, bias)
    jax.block_until_ready(out)
    ref = x @ weight.T + bias
    assert out.shape == (batch, 2)
    assert jnp.allclose(out, ref, atol=1e-5, rtol=1e-5)

    # Lock in remainder handling: B not a multiple of the batch tile
    # (B=20 -> tb=16 -> grid of 2 with a masked partial block).
    x2 = jax.random.normal(k_x2, (20, input_size), dtype=jnp.float32)
    out2 = critic_head2(x2, weight, bias)
    jax.block_until_ready(out2)
    ref2 = x2 @ weight.T + bias
    assert out2.shape == (20, 2)
    assert jnp.allclose(out2, ref2, atol=1e-5, rtol=1e-5)

    print("KERNEL_OK")
</pallas_src>

<mosaic_0001>
module attributes {stable_mosaic.version = 11 : i64} {
  func.func @_critic_head2_kernel(%arg0: i32, %arg1: memref<8x32xf32, #tpu.memory_space<vmem>>, %arg2: memref<2x32xf32, #tpu.memory_space<vmem>>, %arg3: memref<1x2xf32, #tpu.memory_space<vmem>>, %arg4: memref<8x2xf32, #tpu.memory_space<vmem>>) attributes {dimension_semantics = [#tpu.dimension_semantics<parallel>], iteration_bounds = array<i64: 1>, scalar_prefetch = 0 : i64, scratch_operands = 0 : i64, tpu.core_type = #tpu.core_type<tc>, window_params = [{transform_indices = @transform_0, window_bounds = array<i64: 8, 32>}, {pipeline_mode = #tpu.pipeline_mode<synchronous>, transform_indices = @transform_1, window_bounds = array<i64: 2, 32>}, {pipeline_mode = #tpu.pipeline_mode<synchronous>, transform_indices = @transform_2, window_bounds = array<i64: 1, 2>}, {transform_indices = @transform_3, window_bounds = array<i64: 8, 2>}]} {
    %c0 = arith.constant 0 : index
    %c0_0 = arith.constant 0 : index
    %0 = vector.load %arg1[%c0, %c0_0] : memref<8x32xf32, #tpu.memory_space<vmem>>, vector<8x32xf32>
    %c0_1 = arith.constant 0 : index
    %c0_2 = arith.constant 0 : index
    %1 = vector.load %arg2[%c0_1, %c0_2] : memref<2x32xf32, #tpu.memory_space<vmem>>, vector<2x32xf32>
    %cst = arith.constant dense<0.000000e+00> : vector<8x2xf32>
    %2 = tpu.matmul %0, %1, %cst {dimension_numbers = #tpu.dot_dimension_numbers<[1], [1], [0], [0], [0, 0, 1, 0], [], []>} : vector<8x32xf32>, vector<2x32xf32>, vector<8x2xf32> -> vector<8x2xf32>
    %c0_3 = arith.constant 0 : index
    %c0_4 = arith.constant 0 : index
    %3 = vector.load %arg3[%c0_3, %c0_4] : memref<1x2xf32, #tpu.memory_space<vmem>>, vector<1x2xf32>
    %4 = vector.broadcast %3 : vector<1x2xf32> to vector<8x2xf32>
    %5 = arith.addf %2, %4 : vector<8x2xf32>
    %c0_5 = arith.constant 0 : index
    %c0_6 = arith.constant 0 : index
    %6 = vector.load %arg4[%c0_5, %c0_6] : memref<8x2xf32, #tpu.memory_space<vmem>>, vector<8x2xf32>
    tpu.vector_store %arg4[%c0_5, %c0_6], %5 {strides = array<i32>} : memref<8x2xf32, #tpu.memory_space<vmem>>, vector<8x2xf32>,
    return
  }
  func.func @transform_0(%arg0: i32) -> (i32, i32) {
    %c0_i32 = arith.constant 0 : i32
    %c0_i32_0 = arith.constant 0 : i32
    return %arg0, %c0_i32 : i32, i32
  }
  func.func @transform_1(%arg0: i32) -> (i32, i32) {
    %c0_i32 = arith.constant 0 : i32
    %c0_i32_0 = arith.constant 0 : i32
    %c0_i32_1 = arith.constant 0 : i32
    return %c0_i32, %c0_i32_0 : i32, i32
  }
  func.func @transform_2(%arg0: i32) -> (i32, i32) {
    %c0_i32 = arith.constant 0 : i32
    %c0_i32_0 = arith.constant 0 : i32
    %c0_i32_1 = arith.constant 0 : i32
    return %c0_i32, %c0_i32_0 : i32, i32
  }
  func.func @transform_3(%arg0: i32) -> (i32, i32) {
    %c0_i32 = arith.constant 0 : i32
    %c0_i32_0 = arith.constant 0 : i32
    return %arg0, %c0_i32 : i32, i32
  }
}

</mosaic_0001>

<llo_original>
// kernel: critic_head2.1
$region0: #{critic_head2.1}
  #allocation0 [shape = 'u32[]', space=smem, size = 0x4, offset = 0x4, fixed_abs, tag = 'smem constant byte address 0x4 - core index']
  #allocation1 [shape = 'u32[72,128]{1,0:T(1,128)}', space=vmem, size = 0x9000, scoped, tag = 'internal scratch']
  %s0 = inlined_call_operand.hbm [shape: f32[8,32], index: 0, kind: input, shape index: {}]
  %s1 = inlined_call_operand.hbm [shape: f32[2,32], index: 1, kind: input, shape index: {}]
  %s2 = inlined_call_operand.vmem [shape: f32[1,2], index: 2, kind: input, shape index: {}]
  %s3 = inlined_call_operand.vmem [shape: f32[8,2], index: 3, kind: output, shape index: {}]
  %s4 = sld [smem:[#allocation0]]
  $region30: #{critic_head2.1} parent=0
    _
  %s6 = ssub.s32 1, %s4
  %s7 = scalar_select 0, %s6, %s4
  $region1: #{critic_head2.1} parent=0
    #allocation2 [shape = 'u8[4096]{0}', space=vmem, size = 0x1000, scoped, tag = 'input window, operand 0, single buffered']
    #allocation3 [shape = 's32[1]{0}', space=sflag, size = 0x4, scoped, tag = 'scoped memory for critic_head2.1']
    #allocation4 [shape = 'u8[1024]{0}', space=vmem, size = 0x400, scoped, tag = 'input window, operand 1, single buffered']
    #allocation5 [shape = 's32[1]{0}', space=sflag, size = 0x4, scoped, tag = 'scoped memory for critic_head2.1']
    %8 = vsyncpa [#allocation3], 0
    %9 = vsyncpa [#allocation5], 0
    // Predicated region
    $region2: #{critic_head2.1} parent=1 // pred_check
      _
    $region3: #{critic_head2.1} parent=1 // pred_check_branch
      %11 = sbr.rel (0) target = $region5
    $region4: #{critic_head2.1} parent=1 // pred_region
      %13 = vsyncadd [#allocation3], 0
      %s15 = sshll.u32 %s0, 4
      %s16 = int_to_ptr.hbm [resolvable:$true] %s15
      %s17 = sshll.u32 [#allocation2], 4
      %s18 = int_to_ptr.vmem [resolvable:$true] %s17
      %20 = dma.hbm_to_vmem [thread:$0]  %s16, 128, %s18, [#allocation3]
    $region5: #{critic_head2.1} parent=1 // pred_fallthru
      _
    // Predicated region
    $region6: #{critic_head2.1} parent=1 // pred_check
      _
    $region7: #{critic_head2.1} parent=1 // pred_check_branch
      %22 = sbr.rel (0) target = $region9
    $region8: #{critic_head2.1} parent=1 // pred_region
      %24 = vsyncadd [#allocation5], 0
      %s26 = sshll.u32 %s1, 4
      %s27 = int_to_ptr.hbm [resolvable:$true] %s26
      %s28 = sshll.u32 [#allocation4], 4
      %s29 = int_to_ptr.vmem [resolvable:$true] %s28
      %31 = dma.hbm_to_vmem [thread:$0]  %s27, 32, %s29, [#allocation5]
    $region9: #{critic_head2.1} parent=1 // pred_fallthru
      _
    // Predicated region
    $region10: #{critic_head2.1} parent=1 // pred_check
      _
    $region11: #{critic_head2.1} parent=1 // pred_check_branch
      %33 = sbr.rel (0) target = $region13
    $region12: #{critic_head2.1} parent=1 // pred_region
      _
    $region13: #{critic_head2.1} parent=1 // pred_fallthru
      _
    // Predicated region
    $region14: #{critic_head2.1} parent=1 // pred_check
      _
    $region15: #{critic_head2.1} parent=1 // pred_check_branch
      %35 = sbr.rel (0) target = $region17
    $region16: #{critic_head2.1} parent=1 // pred_region
      %37 = dma.done [#allocation3], 128
    $region17: #{critic_head2.1} parent=1 // pred_fallthru
      _
    // Predicated region
    $region18: #{critic_head2.1} parent=1 // pred_check
      _
    $region19: #{critic_head2.1} parent=1 // pred_check_branch
      %39 = sbr.rel (0) target = $region21
    $region20: #{critic_head2.1} parent=1 // pred_region
      %41 = dma.done [#allocation5], 32
    $region21: #{critic_head2.1} parent=1 // pred_fallthru
      _
    %v42 = vld [vmem:[#allocation2] sm:$0xff]
    %v43 = vld [vmem:[#allocation4] sm:$0x3]
    %v44 = vld [vmem:[%s2] sm:$0x1]
    %v46 = vperm.slane %v44, 0
    %vm48 = vcmask 261120
    %v50 = vsel %vm48, %v42, 0
    %v53 = vsel %vm48, %v43, 0
    %55 = vmatpush.xpose.msra.mxu0 0.0
    %56 = vmatpush.xpose.msra.mxu0 0.0
    %57 = vmatpush.xpose.msra.mxu0 0.0
    %58 = vmatpush.xpose.msra.mxu0 0.0
    %59 = vmatpush.xpose.msra.mxu0 0.0
    %60 = vmatpush.xpose.msra.mxu0 0.0
    %61 = vmatpush.xpose.msra.mxu0 0.0
    %62 = vmatpush.xpose.msra.mxu0 0.0
    %63 = vmatpush.xpose.msra.mxu0 0.0
    %64 = vmatpush.xpose.msra.mxu0 0.0
    %65 = vmatpush.xpose.msra.mxu0 0.0
    %66 = vmatpush.xpose.msra.mxu0 0.0
    %67 = vmatpush.xpose.msra.mxu0 0.0
    %68 = vmatpush.xpose.msra.mxu0 0.0
    %69 = vmatpush.xpose.msra.mxu0 0.0
    %70 = vmatpush.xpose.msra.mxu0 %v53
    %71 = vmatmul.f32.gmra.mxu0 %v50
    %v72 = vpop.f32.mrf.mxu0
    %v73 = vadd.f32 %v46, %v72
    %74 = vdwg.mxu0
    %vm75 = vcmask 15360
    %76 = vst.msk [vmem:[%s3] sm:$0xff] %vm75, %v73
    // Predicated region
    $region22: #{critic_head2.1} parent=1 // pred_check
      _
    $region23: #{critic_head2.1} parent=1 // pred_check_branch
      %78 = sbr.rel (0) target = $region25
    $region24: #{critic_head2.1} parent=1 // pred_region
      _
    $region25: #{critic_head2.1} parent=1 // pred_fallthru
      _
    // Predicated region
    $region26: #{critic_head2.1} parent=1 // pred_check
      _
    $region27: #{critic_head2.1} parent=1 // pred_check_branch
      %80 = sbr.rel (0) target = $region29
    $region28: #{critic_head2.1} parent=1 // pred_region
      _
    $region29: #{critic_head2.1} parent=1 // pred_fallthru
      _
    %81 = vsyncpa [#allocation3], 1
    %82 = vsyncpa [#allocation5], 1

</llo_original>
